<compile_context>
chip_gen: v7x
topology: tpu7x:2x2x1
jax: 0.10.0
libtpu: 0.0.40
codegen_flags: <defaults>
</compile_context>

<pallas_src>
import functools

import jax
import jax.numpy as jnp
from jax.experimental import pallas as pl
from jax.experimental.pallas import tpu as pltpu

LN_EPS = 1e-5  # nn.LayerNorm default


# ----------------------------------------------------------------------------- shared math ----
def _ln_project(xm_f32, w_bf, csum, bias):
    """LayerNorm(4c) (affine folded into w_bf / bias) followed by the projection.

    xm_f32: (rows, 4c) f32    w_bf: (4c, c) bf16 (gamma folded, rows permuted)
    csum:   (1, c) f32 column sums of the folded weight      bias: (1, c) f32 = beta @ W^T
    """
    c4 = xm_f32.shape[-1]
    inv_c4 = 1.0 / float(c4)
    s1 = jnp.sum(xm_f32, axis=-1, keepdims=True)
    s2 = jnp.sum(xm_f32 * xm_f32, axis=-1, keepdims=True)
    mean = s1 * inv_c4
    var = jnp.maximum(s2 * inv_c4 - mean * mean, 0.0)          # clamp: no negative var -> NaN
    inv_std = jax.lax.rsqrt(var + LN_EPS)
    acc = jnp.dot(xm_f32.astype(w_bf.dtype), w_bf,
                  preferred_element_type=jnp.float32)          # bf16 MXU, f32 accumulate
    return (acc - mean * csum) * inv_std + bias                # mean folded via colsum


# --------------------------------------------------------------------------- fused kernel ----
def _fused_kernel(x_ref, w_ref, csum_ref, b_ref, o_ref, *, h, w, c):
    # x_ref: (1, n, c) f32 (whole sequence of one batch element)
    # o_ref: (1, L+2, c) -- [cls | projected merged tokens | dstl]
    n = x_ref.shape[1]
    L = (h // 2) * (w // 2)

    x = x_ref[0]                                   # (n, c)
    body = x[1:1 + h * w, :]                       # drop cls/dstl rows (static slice)

    # 2x2 merge, all on-chip.  Only "last-dim-preserving" reshapes + static indexing are used.
    rows = body.reshape(h // 2, 2, w, c)
    er = rows[:, 0].reshape(h // 2, w // 2, 2, c)   # even source rows
    od = rows[:, 1].reshape(h // 2, w // 2, 2, c)   # odd source rows
    x00 = er[:, :, 0, :]                            # (row even, col even)  == torch x0
    x01 = er[:, :, 1, :]                            # (row even, col odd )  == torch x2
    x10 = od[:, :, 0, :]                            # (row odd , col even)  == torch x1
    x11 = od[:, :, 1, :]                            # (row odd , col odd )  == torch x3
    xm = jnp.concatenate([x00, x01, x10, x11], axis=-1).reshape(L, 4 * c)
    xm = xm.astype(jnp.float32)

    y = _ln_project(xm, w_ref[...], csum_ref[...], b_ref[...])

    # Assemble the final output block directly: cls / projected tokens / dstl.
    o_ref[0, 0:1, :] = x[0:1, :].astype(o_ref.dtype)
    o_ref[0, 1:1 + L, :] = y.astype(o_ref.dtype)
    o_ref[0, 1 + L:2 + L, :] = x[n - 1:n, :].astype(o_ref.dtype)


def _fused_call(x, w_bf, csum, bias, *, h, w):
    bs, n, c = x.shape
    L = (h // 2) * (w // 2)
    kern = functools.partial(_fused_kernel, h=h, w=w, c=c)

    itemsize = x.dtype.itemsize
    in_block = 2 * n * c * itemsize                       # double-buffered input block
    out_block = 2 * (L + 2) * c * itemsize                # double-buffered output block
    w_block = 2 * w_bf.size * w_bf.dtype.itemsize         # (conservative: 2 buffers)
    interm = 6 * L * 4 * c * 4                            # f32 merge/square/bf16/acc temporaries
    vmem_limit = int(min(max(32 * 1024 * 1024,
                             1.25 * (in_block + out_block + w_block + interm)),
                         100 * 1024 * 1024))

    cost = pl.CostEstimate(
        flops=2 * bs * L * (4 * c) * c,
        transcendentals=0,
        bytes_accessed=bs * n * c * itemsize + bs * (L + 2) * c * itemsize
        + w_bf.size * w_bf.dtype.itemsize,
    )

    return pl.pallas_call(
        kern,
        out_shape=jax.ShapeDtypeStruct((bs, L + 2, c), x.dtype),
        grid_spec=pltpu.PrefetchScalarGridSpec(
            num_scalar_prefetch=0,
            grid=(bs,),
            in_specs=[
                pl.BlockSpec((1, n, c), lambda b: (b, 0, 0)),      # one batch element
                pl.BlockSpec((4 * c, c), lambda b: (0, 0)),        # folded weight (resident)
                pl.BlockSpec((1, c), lambda b: (0, 0)),            # colsum(Wf)
                pl.BlockSpec((1, c), lambda b: (0, 0)),            # beta @ W^T
            ],
            out_specs=pl.BlockSpec((1, L + 2, c), lambda b: (b, 0, 0)),
        ),
        compiler_params=pltpu.CompilerParams(
            dimension_semantics=("parallel",),
            vmem_limit_bytes=vmem_limit,
        ),
        cost_estimate=cost,
    )(x, w_bf, csum, bias)


# ---------------------------------------------------------- fallback (wrapper-gather) path ----
def _slab_kernel(x_ref, w_ref, csum_ref, b_ref, o_ref):
    y = _ln_project(x_ref[...].astype(jnp.float32), w_ref[...], csum_ref[...], b_ref[...])
    o_ref[...] = y.astype(o_ref.dtype)


def _slab_call(x2d, w_bf, csum, bias, out_dtype):
    M, c4 = x2d.shape
    c = w_bf.shape[1]
    tm = M if M <= 512 else 512
    return pl.pallas_call(
        _slab_kernel,
        out_shape=jax.ShapeDtypeStruct((M, c), out_dtype),
        grid=(pl.cdiv(M, tm),),
        in_specs=[
            pl.BlockSpec((tm, c4), lambda i: (i, 0)),
            pl.BlockSpec((c4, c), lambda i: (0, 0)),
            pl.BlockSpec((1, c), lambda i: (0, 0)),
            pl.BlockSpec((1, c), lambda i: (0, 0)),
        ],
        out_specs=pl.BlockSpec((tm, c), lambda i: (i, 0)),
        compiler_params=pltpu.CompilerParams(
            dimension_semantics=("parallel",),
            vmem_limit_bytes=64 * 1024 * 1024,
        ),
    )(x2d, w_bf, csum, bias)


# --------------------------------------------------------------------------------- module ----
class PatchMergingPallas:
    """JAX/Pallas port of the PyTorch PatchMerging module."""

    def __init__(self, dim, num_extra_tokens, key, compute_dtype=jnp.bfloat16):
        self.dim = dim
        self.num_extra_tokens = num_extra_tokens
        self.compute_dtype = compute_dtype
        self._use_fused = None   # decided on first call

        # nn.Linear(4*dim, dim, bias=False): weight (dim, 4*dim); keep its transpose.
        bound = 1.0 / (4.0 * dim) ** 0.5
        w_lin = jax.random.uniform(key, (dim, 4 * dim), dtype=jnp.float32,
                                   minval=-bound, maxval=bound)
        self.w_t = jnp.transpose(w_lin)                     # (4c, c) f32, torch channel order
        # nn.LayerNorm(4*dim) default init
        self.gamma = jnp.ones((4 * dim,), jnp.float32)
        self.beta = jnp.zeros((4 * dim,), jnp.float32)

        c = dim
        wf = self.gamma[:, None] * self.w_t                 # gamma folded, torch row order
        # Kernel channel order is [x0, x2, x1, x3] -> permute the weight's row blocks.
        w_perm = jnp.concatenate(
            [wf[0:c], wf[2 * c:3 * c], wf[c:2 * c], wf[3 * c:4 * c]], axis=0)
        self.w_fold = w_perm.astype(compute_dtype)          # (4c, c) bf16
        self.csum = jnp.sum(wf, axis=0, keepdims=True).astype(jnp.float32)   # (1, c)
        self.b_fold = (self.beta @ self.w_t).reshape(1, c).astype(jnp.float32)

    # ---- forward -----------------------------------------------------------------------
    def __call__(self, x, mask):
        bs, n, c = x.shape
        h = w = int(round((n - self.num_extra_tokens) ** 0.5))

        y = None
        if self._use_fused is not False:
            try:
                y = _fused_call(x, self.w_fold, self.csum, self.b_fold, h=h, w=w)
                if self._use_fused is None:
                    jax.block_until_ready(y)
                    self._use_fused = True
            except Exception:
                # Safety net for Mosaic builds without general in-kernel relayout support.
                self._use_fused = False
                y = None
        if y is None:
            y = self._fallback_forward(x, h, w)

        return y, self._merge_mask(mask, bs, h, w)

    def _fallback_forward(self, x, h, w):
        bs, n, c = x.shape
        L = (h // 2) * (w // 2)
        cls_tok = x[:, 0:1, :]
        dstl_tok = x[:, -1:, :]
        xb = x[:, 1:-1, :].reshape(bs, h, w, c)
        # Kernel channel order [x0, x2, x1, x3] to match the permuted weight.
        xm = jnp.concatenate(
            [xb[:, 0::2, 0::2, :], xb[:, 0::2, 1::2, :],
             xb[:, 1::2, 0::2, :], xb[:, 1::2, 1::2, :]], axis=-1)
        y2d = _slab_call(xm.reshape(bs * L, 4 * c), self.w_fold, self.csum,
                         self.b_fold, x.dtype)
        y = y2d.reshape(bs, L, c)
        return jnp.concatenate([cls_tok, y, dstl_tok], axis=1)

    @staticmethod
    def _merge_mask(mask, bs, h, w):
        # torch: ~(~m0 + ~m1 + ~m2 + ~m3) == m0 & m1 & m2 & m3 (trivial bool glue, left in XLA).
        cls_mask = mask[:, 0:1]
        dstl_mask = mask[:, -1:]
        mb = mask[:, 1:-1].reshape(bs, h, w)
        mm = (mb[:, 0::2, 0::2] & mb[:, 1::2, 0::2]
              & mb[:, 0::2, 1::2] & mb[:, 1::2, 1::2]).reshape(bs, -1)
        return jnp.concatenate([cls_mask, mm, dstl_mask], axis=1)


# ------------------------------------------------------------------------------ reference ----
def _reference(x, mask, gamma, beta, w_t, num_extra_tokens):
    """Pure-JAX f32 reference mirroring the PyTorch module."""
    bs, n, c = x.shape
    h = w = int(round((n - num_extra_tokens) ** 0.5))
    cls_tokens = x[:, 0:1, :]
    dstl_tokens = x[:, -1:, :]
    xb = x[:, 1:-1, :].reshape(bs, h, w, c)
    xm = jnp.concatenate(
        [xb[:, 0::2, 0::2, :], xb[:, 1::2, 0::2, :],
         xb[:, 0::2, 1::2, :], xb[:, 1::2, 1::2, :]], axis=-1
    ).reshape(bs, -1, 4 * c)
    mean = jnp.mean(xm, axis=-1, keepdims=True)
    var = jnp.mean((xm - mean) ** 2, axis=-1, keepdims=True)
    xn = (xm - mean) / jnp.sqrt(var + LN_EPS) * gamma + beta
    y = xn @ w_t
    y = jnp.concatenate([cls_tokens, y, dstl_tokens], axis=1)

    cls_mask = mask[:, 0:1]
    dstl_mask = mask[:, -1:]
    mb = mask[:, 1:-1].reshape(bs, h, w)
    mm = (mb[:, 0::2, 0::2] & mb[:, 1::2, 0::2]
          & mb[:, 0::2, 1::2] & mb[:, 1::2, 1::2]).reshape(bs, -1)
    m_out = jnp.concatenate([cls_mask, mm, dstl_mask], axis=1)
    return y, m_out


if __name__ == "__main__":
    dim = 32                 # token channel dim c
    num_extra_tokens = 2     # cls + dstl
    bs, hh = 2, 8            # spatial grid h = w = 8
    n = hh * hh + num_extra_tokens

    key = jax.random.PRNGKey(0)
    k_x, k_m, k_p = jax.random.split(key, 3)

    x = jax.random.normal(k_x, (bs, n, dim), dtype=jnp.float32)
    mask = jax.random.uniform(k_m, (bs, n)) > 0.3   # bool mask

    module = PatchMergingPallas(dim, num_extra_tokens, k_p)

    y, m_out = module(x, mask)
    y = jax.block_until_ready(y)
    m_out = jax.block_until_ready(m_out)

    assert y.shape == (bs, 1 + (hh // 2) * (hh // 2) + 1, dim)
    assert m_out.shape == (bs, 1 + (hh // 2) * (hh // 2) + 1)

    y_ref, m_ref = _reference(x, mask, module.gamma, module.beta, module.w_t,
                              num_extra_tokens)
    # bf16 MXU operands with f32 accumulation (stats in f32) => loose tolerance vs f32 ref.
    assert jnp.allclose(y, y_ref, atol=3e-2, rtol=3e-2), \
        float(jnp.max(jnp.abs(y - y_ref)))
    assert bool(jnp.all(m_out == m_ref))

    print("KERNEL_OK")
</pallas_src>

<mosaic_0001>
module attributes {stable_mosaic.version = 11 : i64} {
  func.func @_fused_kernel(%arg0: i32, %arg1: memref<1x66x32xf32, #tpu.memory_space<vmem>>, %arg2: memref<128x32xbf16, #tpu.memory_space<vmem>>, %arg3: memref<1x32xf32, #tpu.memory_space<vmem>>, %arg4: memref<1x32xf32, #tpu.memory_space<vmem>>, %arg5: memref<1x18x32xf32, #tpu.memory_space<vmem>>) attributes {dimension_semantics = [#tpu.dimension_semantics<parallel>], iteration_bounds = array<i64: 2>, scalar_prefetch = 0 : i64, scratch_operands = 0 : i64, tpu.core_type = #tpu.core_type<tc>, window_params = [{transform_indices = @transform_0, window_bounds = array<i64: 1, 66, 32>}, {pipeline_mode = #tpu.pipeline_mode<synchronous>, transform_indices = @transform_1, window_bounds = array<i64: 128, 32>}, {pipeline_mode = #tpu.pipeline_mode<synchronous>, transform_indices = @transform_2, window_bounds = array<i64: 1, 32>}, {pipeline_mode = #tpu.pipeline_mode<synchronous>, transform_indices = @transform_3, window_bounds = array<i64: 1, 32>}, {transform_indices = @transform_4, window_bounds = array<i64: 1, 18, 32>}]} {
    %c0 = arith.constant 0 : index
    %c0_0 = arith.constant 0 : index
    %c0_1 = arith.constant 0 : index
    %0 = vector.load %arg1[%c0, %c0_0, %c0_1] : memref<1x66x32xf32, #tpu.memory_space<vmem>>, vector<1x66x32xf32>
    %1 = vector.shape_cast %0 : vector<1x66x32xf32> to vector<66x32xf32>
    %2 = vector.extract_strided_slice %1 {offsets = [1, 0], sizes = [64, 32], strides = [1, 1]} : vector<66x32xf32> to vector<64x32xf32>
    %3 = vector.shape_cast %2 : vector<64x32xf32> to vector<4x2x8x32xf32>
    %4 = vector.extract_strided_slice %3 {offsets = [0, 0, 0, 0], sizes = [4, 1, 8, 32], strides = [1, 1, 1, 1]} : vector<4x2x8x32xf32> to vector<4x1x8x32xf32>
    %5 = vector.shape_cast %4 : vector<4x1x8x32xf32> to vector<4x8x32xf32>
    %6 = vector.shape_cast %5 : vector<4x8x32xf32> to vector<4x4x2x32xf32>
    %7 = vector.extract_strided_slice %3 {offsets = [0, 1, 0, 0], sizes = [4, 1, 8, 32], strides = [1, 1, 1, 1]} : vector<4x2x8x32xf32> to vector<4x1x8x32xf32>
    %8 = vector.shape_cast %7 : vector<4x1x8x32xf32> to vector<4x8x32xf32>
    %9 = vector.shape_cast %8 : vector<4x8x32xf32> to vector<4x4x2x32xf32>
    %10 = vector.extract_strided_slice %6 {offsets = [0, 0, 0, 0], sizes = [4, 4, 1, 32], strides = [1, 1, 1, 1]} : vector<4x4x2x32xf32> to vector<4x4x1x32xf32>
    %11 = vector.shape_cast %10 : vector<4x4x1x32xf32> to vector<4x4x32xf32>
    %12 = vector.extract_strided_slice %6 {offsets = [0, 0, 1, 0], sizes = [4, 4, 1, 32], strides = [1, 1, 1, 1]} : vector<4x4x2x32xf32> to vector<4x4x1x32xf32>
    %13 = vector.shape_cast %12 : vector<4x4x1x32xf32> to vector<4x4x32xf32>
    %14 = vector.extract_strided_slice %9 {offsets = [0, 0, 0, 0], sizes = [4, 4, 1, 32], strides = [1, 1, 1, 1]} : vector<4x4x2x32xf32> to vector<4x4x1x32xf32>
    %15 = vector.shape_cast %14 : vector<4x4x1x32xf32> to vector<4x4x32xf32>
    %16 = vector.extract_strided_slice %9 {offsets = [0, 0, 1, 0], sizes = [4, 4, 1, 32], strides = [1, 1, 1, 1]} : vector<4x4x2x32xf32> to vector<4x4x1x32xf32>
    %17 = vector.shape_cast %16 : vector<4x4x1x32xf32> to vector<4x4x32xf32>
    %18 = tpu.concatenate %11, %13, %15, %17 in 2 : vector<4x4x32xf32>, vector<4x4x32xf32>, vector<4x4x32xf32>, vector<4x4x32xf32> -> vector<4x4x128xf32>
    %19 = vector.shape_cast %18 : vector<4x4x128xf32> to vector<16x128xf32>
    %c0_2 = arith.constant 0 : index
    %c0_3 = arith.constant 0 : index
    %20 = vector.load %arg2[%c0_2, %c0_3] : memref<128x32xbf16, #tpu.memory_space<vmem>>, vector<128x32xbf16>
    %c0_4 = arith.constant 0 : index
    %c0_5 = arith.constant 0 : index
    %21 = vector.load %arg3[%c0_4, %c0_5] : memref<1x32xf32, #tpu.memory_space<vmem>>, vector<1x32xf32>
    %c0_6 = arith.constant 0 : index
    %c0_7 = arith.constant 0 : index
    %22 = vector.load %arg4[%c0_6, %c0_7] : memref<1x32xf32, #tpu.memory_space<vmem>>, vector<1x32xf32>
    %cst = arith.constant dense<0.000000e+00> : vector<16xf32>
    %23 = vector.multi_reduction <add>, %19, %cst [1] : vector<16x128xf32> to vector<16xf32>
    %24 = vector.shape_cast %23 : vector<16xf32> to vector<16x1xf32>
    %25 = arith.mulf %19, %19 : vector<16x128xf32>
    %cst_8 = arith.constant dense<0.000000e+00> : vector<16xf32>
    %26 = vector.multi_reduction <add>, %25, %cst_8 [1] : vector<16x128xf32> to vector<16xf32>
    %27 = vector.shape_cast %26 : vector<16xf32> to vector<16x1xf32>
    %cst_9 = arith.constant 7.812500e-03 : f32
    %28 = vector.broadcast %cst_9 : f32 to vector<16x1xf32>
    %29 = arith.mulf %24, %28 : vector<16x1xf32>
    %cst_10 = arith.constant 7.812500e-03 : f32
    %30 = vector.broadcast %cst_10 : f32 to vector<16x1xf32>
    %31 = arith.mulf %27, %30 : vector<16x1xf32>
    %32 = arith.mulf %29, %29 : vector<16x1xf32>
    %33 = arith.subf %31, %32 : vector<16x1xf32>
    %cst_11 = arith.constant 0.000000e+00 : f32
    %34 = vector.broadcast %cst_11 : f32 to vector<16x1xf32>
    %35 = arith.maximumf %33, %34 : vector<16x1xf32>
    %cst_12 = arith.constant 9.99999974E-6 : f32
    %36 = vector.broadcast %cst_12 : f32 to vector<16x1xf32>
    %37 = arith.addf %35, %36 : vector<16x1xf32>
    %38 = math.rsqrt %37 : vector<16x1xf32>
    %39 = arith.truncf %19 : vector<16x128xf32> to vector<16x128xbf16>
    %cst_13 = arith.constant dense<0.000000e+00> : vector<16x32xf32>
    %40 = tpu.matmul %39, %20, %cst_13 {dimension_numbers = #tpu.dot_dimension_numbers<[1], [0], [0], [1], [0, 0, 1, 1], [], []>} : vector<16x128xbf16>, vector<128x32xbf16>, vector<16x32xf32> -> vector<16x32xf32>
    %41 = vector.broadcast %29 : vector<16x1xf32> to vector<16x32xf32>
    %42 = vector.broadcast %21 : vector<1x32xf32> to vector<16x32xf32>
    %43 = arith.mulf %41, %42 : vector<16x32xf32>
    %44 = arith.subf %40, %43 : vector<16x32xf32>
    %45 = vector.broadcast %38 : vector<16x1xf32> to vector<16x32xf32>
    %46 = arith.mulf %44, %45 : vector<16x32xf32>
    %47 = vector.broadcast %22 : vector<1x32xf32> to vector<16x32xf32>
    %48 = arith.addf %46, %47 : vector<16x32xf32>
    %49 = vector.extract_strided_slice %1 {offsets = [0, 0], sizes = [1, 32], strides = [1, 1]} : vector<66x32xf32> to vector<1x32xf32>
    %c0_14 = arith.constant 0 : index
    %c0_15 = arith.constant 0 : index
    %c0_16 = arith.constant 0 : index
    %50 = vector.load %arg5[%c0_14, %c0_15, %c0_16] : memref<1x18x32xf32, #tpu.memory_space<vmem>>, vector<1x1x32xf32>
    %51 = vector.shape_cast %50 : vector<1x1x32xf32> to vector<1x32xf32>
    %52 = vector.shape_cast %49 : vector<1x32xf32> to vector<1x1x32xf32>
    tpu.vector_store %arg5[%c0_14, %c0_15, %c0_16], %52 {strides = array<i32>} : memref<1x18x32xf32, #tpu.memory_space<vmem>>, vector<1x1x32xf32>,
    %c0_17 = arith.constant 0 : index
    %c1 = arith.constant 1 : index
    %c0_18 = arith.constant 0 : index
    %53 = vector.load %arg5[%c0_17, %c1, %c0_18] : memref<1x18x32xf32, #tpu.memory_space<vmem>>, vector<1x16x32xf32>
    %54 = vector.shape_cast %53 : vector<1x16x32xf32> to vector<16x32xf32>
    %55 = vector.shape_cast %48 : vector<16x32xf32> to vector<1x16x32xf32>
    tpu.vector_store %arg5[%c0_17, %c1, %c0_18], %55 {strides = array<i32>} : memref<1x18x32xf32, #tpu.memory_space<vmem>>, vector<1x16x32xf32>,
    %56 = vector.extract_strided_slice %1 {offsets = [65, 0], sizes = [1, 32], strides = [1, 1]} : vector<66x32xf32> to vector<1x32xf32>
    %c0_19 = arith.constant 0 : index
    %c17 = arith.constant 17 : index
    %c0_20 = arith.constant 0 : index
    %57 = vector.load %arg5[%c0_19, %c17, %c0_20] : memref<1x18x32xf32, #tpu.memory_space<vmem>>, vector<1x1x32xf32>
    %58 = vector.shape_cast %57 : vector<1x1x32xf32> to vector<1x32xf32>
    %59 = vector.shape_cast %56 : vector<1x32xf32> to vector<1x1x32xf32>
    tpu.vector_store %arg5[%c0_19, %c17, %c0_20], %59 {strides = array<i32>} : memref<1x18x32xf32, #tpu.memory_space<vmem>>, vector<1x1x32xf32>,
    return
  }
  func.func @transform_0(%arg0: i32) -> (i32, i32, i32) {
    %c0_i32 = arith.constant 0 : i32
    %c0_i32_0 = arith.constant 0 : i32
    %c0_i32_1 = arith.constant 0 : i32
    return %arg0, %c0_i32, %c0_i32_0 : i32, i32, i32
  }
  func.func @transform_1(%arg0: i32) -> (i32, i32) {
    %c0_i32 = arith.constant 0 : i32
    %c0_i32_0 = arith.constant 0 : i32
    %c0_i32_1 = arith.constant 0 : i32
    return %c0_i32, %c0_i32_0 : i32, i32
  }
  func.func @transform_2(%arg0: i32) -> (i32, i32) {
    %c0_i32 = arith.constant 0 : i32
    %c0_i32_0 = arith.constant 0 : i32
    %c0_i32_1 = arith.constant 0 : i32
    return %c0_i32, %c0_i32_0 : i32, i32
  }
  func.func @transform_3(%arg0: i32) -> (i32, i32) {
    %c0_i32 = arith.constant 0 : i32
    %c0_i32_0 = arith.constant 0 : i32
    %c0_i32_1 = arith.constant 0 : i32
    return %c0_i32, %c0_i32_0 : i32, i32
  }
  func.func @transform_4(%arg0: i32) -> (i32, i32, i32) {
    %c0_i32 = arith.constant 0 : i32
    %c0_i32_0 = arith.constant 0 : i32
    %c0_i32_1 = arith.constant 0 : i32
    return %arg0, %c0_i32, %c0_i32_0 : i32, i32, i32
  }
}

module attributes {stable_mosaic.version = 11 : i64} {
  func.func @_slab_kernel(%arg0: i32, %arg1: memref<32x128xf32, #tpu.memory_space<vmem>>, %arg2: memref<128x32xbf16, #tpu.memory_space<vmem>>, %arg3: memref<1x32xf32, #tpu.memory_space<vmem>>, %arg4: memref<1x32xf32, #tpu.memory_space<vmem>>, %arg5: memref<32x32xf32, #tpu.memory_space<vmem>>) attributes {dimension_semantics = [#tpu.dimension_semantics<parallel>], iteration_bounds = array<i64: 1>, scalar_prefetch = 0 : i64, scratch_operands = 0 : i64, tpu.core_type = #tpu.core_type<tc>, window_params = [{transform_indices = @transform_0, window_bounds = array<i64: 32, 128>}, {pipeline_mode = #tpu.pipeline_mode<synchronous>, transform_indices = @transform_1, window_bounds = array<i64: 128, 32>}, {pipeline_mode = #tpu.pipeline_mode<synchronous>, transform_indices = @transform_2, window_bounds = array<i64: 1, 32>}, {pipeline_mode = #tpu.pipeline_mode<synchronous>, transform_indices = @transform_3, window_bounds = array<i64: 1, 32>}, {transform_indices = @transform_4, window_bounds = array<i64: 32, 32>}]} {
    %c0 = arith.constant 0 : index
    %c0_0 = arith.constant 0 : index
    %0 = vector.load %arg1[%c0, %c0_0] : memref<32x128xf32, #tpu.memory_space<vmem>>, vector<32x128xf32>
    %c0_1 = arith.constant 0 : index
    %c0_2 = arith.constant 0 : index
    %1 = vector.load %arg2[%c0_1, %c0_2] : memref<128x32xbf16, #tpu.memory_space<vmem>>, vector<128x32xbf16>
    %c0_3 = arith.constant 0 : index
    %c0_4 = arith.constant 0 : index
    %2 = vector.load %arg3[%c0_3, %c0_4] : memref<1x32xf32, #tpu.memory_space<vmem>>, vector<1x32xf32>
    %c0_5 = arith.constant 0 : index
    %c0_6 = arith.constant 0 : index
    %3 = vector.load %arg4[%c0_5, %c0_6] : memref<1x32xf32, #tpu.memory_space<vmem>>, vector<1x32xf32>
    %cst = arith.constant dense<0.000000e+00> : vector<32xf32>
    %4 = vector.multi_reduction <add>, %0, %cst [1] : vector<32x128xf32> to vector<32xf32>
    %5 = vector.shape_cast %4 : vector<32xf32> to vector<32x1xf32>
    %6 = arith.mulf %0, %0 : vector<32x128xf32>
    %cst_7 = arith.constant dense<0.000000e+00> : vector<32xf32>
    %7 = vector.multi_reduction <add>, %6, %cst_7 [1] : vector<32x128xf32> to vector<32xf32>
    %8 = vector.shape_cast %7 : vector<32xf32> to vector<32x1xf32>
    %cst_8 = arith.constant 7.812500e-03 : f32
    %9 = vector.broadcast %cst_8 : f32 to vector<32x1xf32>
    %10 = arith.mulf %5, %9 : vector<32x1xf32>
    %cst_9 = arith.constant 7.812500e-03 : f32
    %11 = vector.broadcast %cst_9 : f32 to vector<32x1xf32>
    %12 = arith.mulf %8, %11 : vector<32x1xf32>
    %13 = arith.mulf %10, %10 : vector<32x1xf32>
    %14 = arith.subf %12, %13 : vector<32x1xf32>
    %cst_10 = arith.constant 0.000000e+00 : f32
    %15 = vector.broadcast %cst_10 : f32 to vector<32x1xf32>
    %16 = arith.maximumf %14, %15 : vector<32x1xf32>
    %cst_11 = arith.constant 9.99999974E-6 : f32
    %17 = vector.broadcast %cst_11 : f32 to vector<32x1xf32>
    %18 = arith.addf %16, %17 : vector<32x1xf32>
    %19 = math.rsqrt %18 : vector<32x1xf32>
    %20 = arith.truncf %0 : vector<32x128xf32> to vector<32x128xbf16>
    %cst_12 = arith.constant dense<0.000000e+00> : vector<32x32xf32>
    %21 = tpu.matmul %20, %1, %cst_12 {dimension_numbers = #tpu.dot_dimension_numbers<[1], [0], [0], [1], [0, 0, 1, 1], [], []>} : vector<32x128xbf16>, vector<128x32xbf16>, vector<32x32xf32> -> vector<32x32xf32>
    %22 = vector.broadcast %10 : vector<32x1xf32> to vector<32x32xf32>
    %23 = vector.broadcast %2 : vector<1x32xf32> to vector<32x32xf32>
    %24 = arith.mulf %22, %23 : vector<32x32xf32>
    %25 = arith.subf %21, %24 : vector<32x32xf32>
    %26 = vector.broadcast %19 : vector<32x1xf32> to vector<32x32xf32>
    %27 = arith.mulf %25, %26 : vector<32x32xf32>
    %28 = vector.broadcast %3 : vector<1x32xf32> to vector<32x32xf32>
    %29 = arith.addf %27, %28 : vector<32x32xf32>
    %c0_13 = arith.constant 0 : index
    %c0_14 = arith.constant 0 : index
    %30 = vector.load %arg5[%c0_13, %c0_14] : memref<32x32xf32, #tpu.memory_space<vmem>>, vector<32x32xf32>
    tpu.vector_store %arg5[%c0_13, %c0_14], %29 {strides = array<i32>} : memref<32x32xf32, #tpu.memory_space<vmem>>, vector<32x32xf32>,
    return
  }
  func.func @transform_0(%arg0: i32) -> (i32, i32) {
    %c0_i32 = arith.constant 0 : i32
    %c0_i32_0 = arith.constant 0 : i32
    return %arg0, %c0_i32 : i32, i32
  }
  func.func @transform_1(%arg0: i32) -> (i32, i32) {
    %c0_i32 = arith.constant 0 : i32
    %c0_i32_0 = arith.constant 0 : i32
    %c0_i32_1 = arith.constant 0 : i32
    return %c0_i32, %c0_i32_0 : i32, i32
  }
  func.func @transform_2(%arg0: i32) -> (i32, i32) {
    %c0_i32 = arith.constant 0 : i32
    %c0_i32_0 = arith.constant 0 : i32
    %c0_i32_1 = arith.constant 0 : i32
    return %c0_i32, %c0_i32_0 : i32, i32
  }
  func.func @transform_3(%arg0: i32) -> (i32, i32) {
    %c0_i32 = arith.constant 0 : i32
    %c0_i32_0 = arith.constant 0 : i32
    %c0_i32_1 = arith.constant 0 : i32
    return %c0_i32, %c0_i32_0 : i32, i32
  }
  func.func @transform_4(%arg0: i32) -> (i32, i32) {
    %c0_i32 = arith.constant 0 : i32
    %c0_i32_0 = arith.constant 0 : i32
    return %arg0, %c0_i32 : i32, i32
  }
}

</mosaic_0001>

<llo_original>
// kernel: tpu_custom_call.1
$region0: #{tpu_custom_call.1}
  #allocation0 [shape = 'u32[]', space=smem, size = 0x4, offset = 0x4, fixed_abs, tag = 'smem constant byte address 0x4 - core index']
  #allocation1 [shape = 'u32[144,128]{1,0:T(1,128)}', space=vmem, size = 0x12000, scoped, tag = 'internal scratch']
  %s0 = inlined_call_operand.vmem [shape: f32[2,66,32], index: 0, kind: input, shape index: {}]
  %s1 = inlined_call_operand.vmem [shape: bf16[128,32], index: 1, kind: input, shape index: {}]
  %s2 = inlined_call_operand.vmem [shape: f32[1,32], index: 2, kind: input, shape index: {}]
  %s3 = inlined_call_operand.vmem [shape: f32[1,32], index: 3, kind: input, shape index: {}]
  %s4 = inlined_call_operand.vmem [shape: f32[2,18,32], index: 4, kind: output, shape index: {}]
  %s5 = sld [smem:[#allocation0]]
  $region49: #{tpu_custom_call.1} parent=0
    _
  %s7 = ssub.s32 1, %s5
  %s8 = scalar_select 0, %s7, %s5
  loop: start=0, step=1, limit=4
  $region2: #{tpu_custom_call.1} parent=0 // loop_pre_header
    _
  $region3: #{tpu_custom_call.1} parent=0 // loop_header
    %s10 = sphi 0, %s14
    %p11 = scmp.ge.s32.totalorder %s10, 4
    %s20 = sphi 0, %s22
    %s23 = sphi 0, %s20
    %s24 = sphi 0, %s23
    %s40 = sphi 0, %s24
    %s44 = sphi 0, %s44
    %s46 = sphi 0, %s44
    %s47 = sphi 0, %s46
    %s61 = sphi 0, %s47
    %s65 = sphi 0, %s65
    %s67 = sphi 0, %s65
    %s68 = sphi 0, %s67
    %s82 = sphi 0, %s68
    %s86 = sphi 0, %s86
    %s88 = sphi 0, %s86
    %s89 = sphi 0, %s88
    %s103 = sphi 0, %s89
    %s109 = sphi 0, %s111
    %s112 = sphi 0, %s109
    %s113 = sphi 0, %s112
    %s129 = sphi 0, %s113
  $region4: #{tpu_custom_call.1} parent=0 // loop_header_branch
    %13 = sbr.rel (%p11) target = $region8
  $region5: #{tpu_custom_call.1} parent=0 // loop_body
    %s15 = ssub.s32 %s10, 1
    %s16 = ssub.s32 %s10, 2
    %s17 = sadd.s32 %s10, 1
    %s18 = ssub.s32 %s10, %s17
    %p19 = scmp.eq.s32.totalorder %s18, 0
    %s21 = sadd.s32 %s20, 1
    %s22 = scalar_select %p19, %s20, %s21
    %p25 = pneg %p19
    %p26 = scmp.eq.s32.totalorder %s10, 1
    %p27 = por %p25, %p26
    %p28 = scmp.ne.s32.totalorder %s20, %s23
    %p29 = scmp.eq.s32.totalorder %s10, 0
    %p30 = por %p28, %p29
    %p31 = scmp.ne.s32.totalorder %s20, %s23
    %p32 = scmp.eq.s32.totalorder %s15, 1
    %p33 = por %p31, %p32
    %p34 = scmp.ne.s32.totalorder %s23, %s24
    %p35 = scmp.eq.s32.totalorder %s15, 0
    %p36 = por %p34, %p35
    %p37 = scmp.ne.s32.totalorder %s23, %s24
    %p38 = scmp.eq.s32.totalorder %s16, 1
    %p39 = por %p37, %p38
    %p41 = scmp.ne.s32.totalorder %s24, %s40
    %p42 = scmp.eq.s32.totalorder %s16, 0
    %p43 = por %p41, %p42
    %s45 = sadd.s32 %s44, 1
    %p48 = scmp.eq.s32.totalorder %s10, 1
    %p49 = scmp.ne.s32.totalorder %s44, %s46
    %p50 = scmp.eq.s32.totalorder %s10, 0
    %p51 = por %p49, %p50
    %p52 = scmp.ne.s32.totalorder %s44, %s46
    %p53 = scmp.eq.s32.totalorder %s15, 1
    %p54 = por %p52, %p53
    %p55 = scmp.ne.s32.totalorder %s46, %s47
    %p56 = scmp.eq.s32.totalorder %s15, 0
    %p57 = por %p55, %p56
    %p58 = scmp.ne.s32.totalorder %s46, %s47
    %p59 = scmp.eq.s32.totalorder %s16, 1
    %p60 = por %p58, %p59
    %p62 = scmp.ne.s32.totalorder %s47, %s61
    %p63 = scmp.eq.s32.totalorder %s16, 0
    %p64 = por %p62, %p63
    %s66 = sadd.s32 %s65, 1
    %p69 = scmp.eq.s32.totalorder %s10, 1
    %p70 = scmp.ne.s32.totalorder %s65, %s67
    %p71 = scmp.eq.s32.totalorder %s10, 0
    %p72 = por %p70, %p71
    %p73 = scmp.ne.s32.totalorder %s65, %s67
    %p74 = scmp.eq.s32.totalorder %s15, 1
    %p75 = por %p73, %p74
    %p76 = scmp.ne.s32.totalorder %s67, %s68
    %p77 = scmp.eq.s32.totalorder %s15, 0
    %p78 = por %p76, %p77
    %p79 = scmp.ne.s32.totalorder %s67, %s68
    %p80 = scmp.eq.s32.totalorder %s16, 1
    %p81 = por %p79, %p80
    %p83 = scmp.ne.s32.totalorder %s68, %s82
    %p84 = scmp.eq.s32.totalorder %s16, 0
    %p85 = por %p83, %p84
    %s87 = sadd.s32 %s86, 1
    %p90 = scmp.eq.s32.totalorder %s10, 1
    %p91 = scmp.ne.s32.totalorder %s86, %s88
    %p92 = scmp.eq.s32.totalorder %s10, 0
    %p93 = por %p91, %p92
    %p94 = scmp.ne.s32.totalorder %s86, %s88
    %p95 = scmp.eq.s32.totalorder %s15, 1
    %p96 = por %p94, %p95
    %p97 = scmp.ne.s32.totalorder %s88, %s89
    %p98 = scmp.eq.s32.totalorder %s15, 0
    %p99 = por %p97, %p98
    %p100 = scmp.ne.s32.totalorder %s88, %s89
    %p101 = scmp.eq.s32.totalorder %s16, 1
    %p102 = por %p100, %p101
    %p104 = scmp.ne.s32.totalorder %s89, %s103
    %p105 = scmp.eq.s32.totalorder %s16, 0
    %p106 = por %p104, %p105
    %s107 = ssub.s32 %s10, %s17
    %p108 = scmp.eq.s32.totalorder %s107, 0
    %s110 = sadd.s32 %s109, 1
    %s111 = scalar_select %p108, %s109, %s110
    %p114 = pneg %p108
    %p115 = scmp.eq.s32.totalorder %s10, 1
    %p116 = por %p114, %p115
    %p117 = scmp.ne.s32.totalorder %s109, %s112
    %p118 = scmp.eq.s32.totalorder %s10, 0
    %p119 = por %p117, %p118
    %p120 = scmp.ne.s32.totalorder %s109, %s112
    %p121 = scmp.eq.s32.totalorder %s15, 1
    %p122 = por %p120, %p121
    %p123 = scmp.ne.s32.totalorder %s112, %s113
    %p124 = scmp.eq.s32.totalorder %s15, 0
    %p125 = por %p123, %p124
    %p126 = scmp.ne.s32.totalorder %s112, %s113
    %p127 = scmp.eq.s32.totalorder %s16, 1
    %p128 = por %p126, %p127
    %p130 = scmp.ne.s32.totalorder %s113, %s129
    %p131 = scmp.eq.s32.totalorder %s16, 0
    %p132 = por %p130, %p131
    %p133 = scmp.le.s32.totalorder 1, %s10
    %p134 = scmp.lt.s32.totalorder %s10, 3
    %p135 = pnand %p133, %p134
    %p136 = pneg %p135
    // Predicated region
    $region9: #{tpu_custom_call.1} parent=5 // pred_check
      _
    $region10: #{tpu_custom_call.1} parent=5 // pred_check_branch
      %138 = sbr.rel (%p135) target = $region12
    $region11: #{tpu_custom_call.1} parent=5 // pred_region
      %s139 = ssub.s32 %s10, 1
      // Predicated region
      $region13: #{tpu_custom_call.1} parent=11 // pred_check
        %p140 = pneg %p57
      $region14: #{tpu_custom_call.1} parent=11 // pred_check_branch
        %142 = sbr.rel (%p140) target = $region16
      $region15: #{tpu_custom_call.1} parent=11 // pred_region
        _
      $region16: #{tpu_custom_call.1} parent=11 // pred_fallthru
        _
      // Predicated region
      $region17: #{tpu_custom_call.1} parent=11 // pred_check
        %p143 = pneg %p78
      $region18: #{tpu_custom_call.1} parent=11 // pred_check_branch
        %145 = sbr.rel (%p143) target = $region20
      $region19: #{tpu_custom_call.1} parent=11 // pred_region
        _
      $region20: #{tpu_custom_call.1} parent=11 // pred_fallthru
        _
      // Predicated region
      $region21: #{tpu_custom_call.1} parent=11 // pred_check
        %p146 = pneg %p99
      $region22: #{tpu_custom_call.1} parent=11 // pred_check_branch
        %148 = sbr.rel (%p146) target = $region24
      $region23: #{tpu_custom_call.1} parent=11 // pred_region
        _
      $region24: #{tpu_custom_call.1} parent=11 // pred_fallthru
        _
    $region12: #{tpu_custom_call.1} parent=5 // pred_fallthru
      _
    %p149 = scmp.lt.s32.totalorder %s10, 2
    // Predicated region
    $region25: #{tpu_custom_call.1} parent=5 // pred_check
      %p150 = pneg %p149
    $region26: #{tpu_custom_call.1} parent=5 // pred_check_branch
      %152 = sbr.rel (%p150) target = $region28
    $region27: #{tpu_custom_call.1} parent=5 // pred_region
      // Predicated region
      $region29: #{tpu_custom_call.1} parent=27 // pred_check
        %p153 = pneg %p30
      $region30: #{tpu_custom_call.1} parent=27 // pred_check_branch
        %155 = sbr.rel (%p153) target = $region32
      $region31: #{tpu_custom_call.1} parent=27 // pred_region
        %p156 = scmp.lt.s32.totalorder %s10, 1
        %s157 = scalar_select %p156, %s10, 1
        %s158 = smul.addr %s157, 9
        %s159 = smul.addr %s158, 8
        %s160 = scalar_lea.vmem %s0, %s159
      $region32: #{tpu_custom_call.1} parent=27 // pred_fallthru
        _
    $region28: #{tpu_custom_call.1} parent=5 // pred_fallthru
      _
    %p161 = scmp.le.s32.totalorder 1, %s10
    %p162 = scmp.lt.s32.totalorder %s10, 3
    %p163 = pnand %p161, %p162
    %p164 = pneg %p163
    // Predicated region
    $region33: #{tpu_custom_call.1} parent=5 // pred_check
      _
    $region34: #{tpu_custom_call.1} parent=5 // pred_check_branch
      %166 = sbr.rel (%p163) target = $region36
    $region35: #{tpu_custom_call.1} parent=5 // pred_region
      %s167 = ssub.s32 %s10, 1
      %p168 = scmp.lt.s32.totalorder %s15, 1
      %s169 = scalar_select %p168, %s15, 1
      %s170 = smul.addr %s169, 9
      %s171 = smul.addr %s170, 8
      %s172 = scalar_lea.vmem %s0, %s171
      %p173 = pneg %p36
      %p174 = pneg %p33
      %p175 = pneg %p57
      %p176 = pneg %p54
      %p177 = pneg %p78
      %p178 = pneg %p75
      %p179 = pneg %p99
      %p180 = pneg %p96
      %p181 = pneg %p125
      %p182 = pneg %p122
      %p183 = scmp.lt.s32.totalorder %s15, 1
      %s184 = scalar_select %p183, %s15, 1
      %s185 = smul.addr %s184, 3
      %s186 = smul.addr %s185, 8
      %s187 = scalar_lea.vmem %s4, %s186
      %p188 = scmp.lt.s32.totalorder %s15, 1
      %s189 = scalar_select %p188, %s15, 1
      %s190 = smul.addr %s189, 9
      %s191 = smul.addr %s190, 8
      %s192 = scalar_lea.vmem %s0, %s191
      %p193 = scmp.lt.s32.totalorder %s15, 1
      %s194 = scalar_select %p193, %s15, 1
      %s195 = smul.addr %s194, 3
      %s196 = smul.addr %s195, 8
      %s197 = scalar_lea.vmem %s4, %s196
      %v199 = vld [vmem:[%s192] sm:$0xff]
      %v200 = vld [vmem:[%s192 + $0x8] sm:$0xff]
      %v201 = vld [vmem:[%s192 + $0x10] sm:$0xff]
      %v202 = vld [vmem:[%s192 + $0x18] sm:$0xff]
      %v203 = vld [vmem:[%s192 + $0x20] sm:$0xff]
      %v204 = vld [vmem:[%s192 + $0x28] sm:$0xff]
      %v205 = vld [vmem:[%s192 + $0x30] sm:$0xff]
      %v206 = vld [vmem:[%s192 + $0x38] sm:$0xff]
      %v207 = vld [vmem:[%s192 + $0x40] sm:$0x3]
      %vm217 = vcmask 1046528
      %v218 = vrot.slane %v199, 1
      %v219 = vrot.slane %v200, 1
      %v220 = vsel %vm217, %v218, %v219
      %v221 = vrot.slane %v201, 1
      %v222 = vsel %vm217, %v219, %v221
      %v223 = vrot.slane %v202, 1
      %v224 = vsel %vm217, %v221, %v223
      %v225 = vrot.slane %v203, 1
      %v226 = vsel %vm217, %v223, %v225
      %v227 = vrot.slane %v204, 1
      %v228 = vsel %vm217, %v225, %v227
      %v229 = vrot.slane %v205, 1
      %v230 = vsel %vm217, %v227, %v229
      %v231 = vrot.slane %v206, 1
      %v232 = vsel %vm217, %v229, %v231
      %v233 = vrot.slane %v207, 1
      %v234 = vsel %vm217, %v231, %v233
      %v235 = vcombine.high %v220, %v220
      %v237 = vunpack.c.l.s4 1983009808
      %v238 = vunpack.c.0.s8 %v237
      %v239 = vlaneseq
      %v240 = vshrl.u32 %v239, 7
      %v241 = vsub.s32 %v238, %v240
      %v242 = vrot.slane %v220, %v241
      %v244 = vunpack.c.l.s4 1983009808
      %v245 = vunpack.c.0.s8 %v244
      %v246 = vlaneseq
      %v247 = vshrl.u32 %v246, 7
      %v248 = vsub.s32 %v245, %v247
      %v249 = vrot.slane %v235, %v248
      %v250 = vcombine.high %v242, %v242
      %v251 = vcombine.high %v249, %v249
      %v252 = vcombine.high %v224, %v224
      %v254 = vunpack.c.l.s4 1983009808
      %v255 = vunpack.c.0.s8 %v254
      %v256 = vlaneseq
      %v257 = vshrl.u32 %v256, 7
      %v258 = vsub.s32 %v255, %v257
      %v259 = vrot.slane %v224, %v258
      %v261 = vunpack.c.l.s4 1983009808
      %v262 = vunpack.c.0.s8 %v261
      %v263 = vlaneseq
      %v264 = vshrl.u32 %v263, 7
      %v265 = vsub.s32 %v262, %v264
      %v266 = vrot.slane %v252, %v265
      %v267 = vcombine.high %v259, %v259
      %v268 = vcombine.high %v266, %v266
      %v269 = vcombine.high %v228, %v228
      %v271 = vunpack.c.l.s4 1983009808
      %v272 = vunpack.c.0.s8 %v271
      %v273 = vlaneseq
      %v274 = vshrl.u32 %v273, 7
      %v275 = vsub.s32 %v272, %v274
      %v276 = vrot.slane %v228, %v275
      %v278 = vunpack.c.l.s4 1983009808
      %v279 = vunpack.c.0.s8 %v278
      %v280 = vlaneseq
      %v281 = vshrl.u32 %v280, 7
      %v282 = vsub.s32 %v279, %v281
      %v283 = vrot.slane %v269, %v282
      %v284 = vcombine.high %v276, %v276
      %v285 = vcombine.high %v283, %v283
      %v286 = vcombine.high %v232, %v232
      %v288 = vunpack.c.l.s4 1983009808
      %v289 = vunpack.c.0.s8 %v288
      %v290 = vlaneseq
      %v291 = vshrl.u32 %v290, 7
      %v292 = vsub.s32 %v289, %v291
      %v293 = vrot.slane %v232, %v292
      %v295 = vunpack.c.l.s4 1983009808
      %v296 = vunpack.c.0.s8 %v295
      %v297 = vlaneseq
      %v298 = vshrl.u32 %v297, 7
      %v299 = vsub.s32 %v296, %v298
      %v300 = vrot.slane %v286, %v299
      %v301 = vcombine.high %v293, %v293
      %v302 = vcombine.high %v300, %v300
      %v303 = vcombine.high %v222, %v222
      %v305 = vunpack.c.l.s4 1983009808
      %v306 = vunpack.c.0.s8 %v305
      %v307 = vlaneseq
      %v308 = vshrl.u32 %v307, 7
      %v309 = vsub.s32 %v306, %v308
      %v310 = vrot.slane %v222, %v309
      %v312 = vunpack.c.l.s4 1983009808
      %v313 = vunpack.c.0.s8 %v312
      %v314 = vlaneseq
      %v315 = vshrl.u32 %v314, 7
      %v316 = vsub.s32 %v313, %v315
      %v317 = vrot.slane %v303, %v316
      %v318 = vcombine.high %v310, %v310
      %v319 = vcombine.high %v317, %v317
      %v320 = vcombine.high %v226, %v226
      %v322 = vunpack.c.l.s4 1983009808
      %v323 = vunpack.c.0.s8 %v322
      %v324 = vlaneseq
      %v325 = vshrl.u32 %v324, 7
      %v326 = vsub.s32 %v323, %v325
      %v327 = vrot.slane %v226, %v326
      %v329 = vunpack.c.l.s4 1983009808
      %v330 = vunpack.c.0.s8 %v329
      %v331 = vlaneseq
      %v332 = vshrl.u32 %v331, 7
      %v333 = vsub.s32 %v330, %v332
      %v334 = vrot.slane %v320, %v333
      %v335 = vcombine.high %v327, %v327
      %v336 = vcombine.high %v334, %v334
      %v337 = vcombine.high %v230, %v230
      %v339 = vunpack.c.l.s4 1983009808
      %v340 = vunpack.c.0.s8 %v339
      %v341 = vlaneseq
      %v342 = vshrl.u32 %v341, 7
      %v343 = vsub.s32 %v340, %v342
      %v344 = vrot.slane %v230, %v343
      %v346 = vunpack.c.l.s4 1983009808
      %v347 = vunpack.c.0.s8 %v346
      %v348 = vlaneseq
      %v349 = vshrl.u32 %v348, 7
      %v350 = vsub.s32 %v347, %v349
      %v351 = vrot.slane %v337, %v350
      %v352 = vcombine.high %v344, %v344
      %v353 = vcombine.high %v351, %v351
      %v354 = vcombine.high %v234, %v234
      %v356 = vunpack.c.l.s4 1983009808
      %v357 = vunpack.c.0.s8 %v356
      %v358 = vlaneseq
      %v359 = vshrl.u32 %v358, 7
      %v360 = vsub.s32 %v357, %v359
      %v361 = vrot.slane %v234, %v360
      %v363 = vunpack.c.l.s4 1983009808
      %v364 = vunpack.c.0.s8 %v363
      %v365 = vlaneseq
      %v366 = vshrl.u32 %v365, 7
      %v367 = vsub.s32 %v364, %v366
      %v368 = vrot.slane %v354, %v367
      %v369 = vcombine.high %v361, %v361
      %v370 = vcombine.high %v368, %v368
      %v371 = vlaneseq
      %v372 = vshrl.u32 %v371, 7
      %v373 = vsub.s32 0, %v372
      %v374 = vrot.slane %v242, %v373
      %v375 = vlaneseq
      %v376 = vshrl.u32 %v375, 7
      %v377 = vsub.s32 0, %v376
      %v378 = vrot.slane %v250, %v377
      %v379 = vlaneseq
      %v380 = vshrl.u32 %v379, 7
      %v381 = vsub.s32 0, %v380
      %v382 = vrot.slane %v249, %v381
      %v383 = vlaneseq
      %v384 = vshrl.u32 %v383, 7
      %v385 = vsub.s32 0, %v384
      %v386 = vrot.slane %v251, %v385
      %v387 = vlaneseq
      %v388 = vshrl.u32 %v387, 7
      %v389 = vsub.s32 0, %v388
      %v390 = vrot.slane %v259, %v389
      %v391 = vlaneseq
      %v392 = vshrl.u32 %v391, 7
      %v393 = vsub.s32 0, %v392
      %v394 = vrot.slane %v267, %v393
      %v395 = vlaneseq
      %v396 = vshrl.u32 %v395, 7
      %v397 = vsub.s32 0, %v396
      %v398 = vrot.slane %v266, %v397
      %v399 = vlaneseq
      %v400 = vshrl.u32 %v399, 7
      %v401 = vsub.s32 0, %v400
      %v402 = vrot.slane %v268, %v401
      %v403 = vlaneseq
      %v404 = vshrl.u32 %v403, 7
      %v405 = vsub.s32 0, %v404
      %v406 = vrot.slane %v276, %v405
      %v407 = vlaneseq
      %v408 = vshrl.u32 %v407, 7
      %v409 = vsub.s32 0, %v408
      %v410 = vrot.slane %v284, %v409
      %v411 = vlaneseq
      %v412 = vshrl.u32 %v411, 7
      %v413 = vsub.s32 0, %v412
      %v414 = vrot.slane %v283, %v413
      %v415 = vlaneseq
      %v416 = vshrl.u32 %v415, 7
      %v417 = vsub.s32 0, %v416
      %v418 = vrot.slane %v285, %v417
      %v419 = vlaneseq
      %v420 = vshrl.u32 %v419, 7
      %v421 = vsub.s32 0, %v420
      %v422 = vrot.slane %v293, %v421
      %v423 = vlaneseq
      %v424 = vshrl.u32 %v423, 7
      %v425 = vsub.s32 0, %v424
      %v426 = vrot.slane %v301, %v425
      %v427 = vlaneseq
      %v428 = vshrl.u32 %v427, 7
      %v429 = vsub.s32 0, %v428
      %v430 = vrot.slane %v300, %v429
      %v431 = vlaneseq
      %v432 = vshrl.u32 %v431, 7
      %v433 = vsub.s32 0, %v432
      %v434 = vrot.slane %v302, %v433
      %vm435 = vcmask 1041409
      %v436 = vsel %vm435, %v378, %v374
      %vm437 = vcmask 1042434
      %v438 = vsel %vm437, %v382, %v436
      %vm439 = vcmask 1043459
      %v440 = vsel %vm439, %v386, %v438
      %v441 = vsel %vm435, %v394, %v390
      %v442 = vsel %vm437, %v398, %v441
      %v443 = vsel %vm439, %v402, %v442
      %v444 = vsel %vm435, %v410, %v406
      %v445 = vsel %vm437, %v414, %v444
      %v446 = vsel %vm439, %v418, %v445
      %v447 = vsel %vm435, %v426, %v422
      %v448 = vsel %vm437, %v430, %v447
      %v449 = vsel %vm439, %v434, %v448
      %v454 = vlaneseq
      %v455 = vshrl.u32 %v454, 7
      %v456 = vsub.s32 1, %v455
      %v457 = vrot.slane %v242, %v456
      %v458 = vlaneseq
      %v459 = vshrl.u32 %v458, 7
      %v460 = vsub.s32 1, %v459
      %v461 = vrot.slane %v250, %v460
      %v462 = vlaneseq
      %v463 = vshrl.u32 %v462, 7
      %v464 = vsub.s32 1, %v463
      %v465 = vrot.slane %v249, %v464
      %v466 = vlaneseq
      %v467 = vshrl.u32 %v466, 7
      %v468 = vsub.s32 1, %v467
      %v469 = vrot.slane %v251, %v468
      %v470 = vlaneseq
      %v471 = vshrl.u32 %v470, 7
      %v472 = vsub.s32 1, %v471
      %v473 = vrot.slane %v259, %v472
      %v474 = vlaneseq
      %v475 = vshrl.u32 %v474, 7
      %v476 = vsub.s32 1, %v475
      %v477 = vrot.slane %v267, %v476
      %v478 = vlaneseq
      %v479 = vshrl.u32 %v478, 7
      %v480 = vsub.s32 1, %v479
      %v481 = vrot.slane %v266, %v480
      %v482 = vlaneseq
      %v483 = vshrl.u32 %v482, 7
      %v484 = vsub.s32 1, %v483
      %v485 = vrot.slane %v268, %v484
      %v486 = vlaneseq
      %v487 = vshrl.u32 %v486, 7
      %v488 = vsub.s32 1, %v487
      %v489 = vrot.slane %v276, %v488
      %v490 = vlaneseq
      %v491 = vshrl.u32 %v490, 7
      %v492 = vsub.s32 1, %v491
      %v493 = vrot.slane %v284, %v492
      %v494 = vlaneseq
      %v495 = vshrl.u32 %v494, 7
      %v496 = vsub.s32 1, %v495
      %v497 = vrot.slane %v283, %v496
      %v498 = vlaneseq
      %v499 = vshrl.u32 %v498, 7
      %v500 = vsub.s32 1, %v499
      %v501 = vrot.slane %v285, %v500
      %v502 = vlaneseq
      %v503 = vshrl.u32 %v502, 7
      %v504 = vsub.s32 1, %v503
      %v505 = vrot.slane %v293, %v504
      %v506 = vlaneseq
      %v507 = vshrl.u32 %v506, 7
      %v508 = vsub.s32 1, %v507
      %v509 = vrot.slane %v301, %v508
      %v510 = vlaneseq
      %v511 = vshrl.u32 %v510, 7
      %v512 = vsub.s32 1, %v511
      %v513 = vrot.slane %v300, %v512
      %v514 = vlaneseq
      %v515 = vshrl.u32 %v514, 7
      %v516 = vsub.s32 1, %v515
      %v517 = vrot.slane %v302, %v516
      %v518 = vsel %vm435, %v461, %v457
      %v519 = vsel %vm437, %v465, %v518
      %v520 = vsel %vm439, %v469, %v519
      %v521 = vsel %vm435, %v477, %v473
      %v522 = vsel %vm437, %v481, %v521
      %v523 = vsel %vm439, %v485, %v522
      %v524 = vsel %vm435, %v493, %v489
      %v525 = vsel %vm437, %v497, %v524
      %v526 = vsel %vm439, %v501, %v525
      %v527 = vsel %vm435, %v509, %v505
      %v528 = vsel %vm437, %v513, %v527
      %v529 = vsel %vm439, %v517, %v528
      %530 = vrot.lane.b32.xlu0 %v520, 32
      %v531 = vpop.permute.xlu0 %530
      %532 = vrot.lane.b32.xlu0 %v523, 32
      %v533 = vpop.permute.xlu0 %532
      %534 = vrot.lane.b32.xlu0 %v526, 32
      %v535 = vpop.permute.xlu0 %534
      %536 = vrot.lane.b32.xlu0 %v529, 32
      %v537 = vpop.permute.xlu0 %536
      %v542 = vlaneseq
      %v543 = vshrl.u32 %v542, 7
      %v544 = vsub.s32 0, %v543
      %v545 = vrot.slane %v310, %v544
      %v546 = vlaneseq
      %v547 = vshrl.u32 %v546, 7
      %v548 = vsub.s32 0, %v547
      %v549 = vrot.slane %v318, %v548
      %v550 = vlaneseq
      %v551 = vshrl.u32 %v550, 7
      %v552 = vsub.s32 0, %v551
      %v553 = vrot.slane %v317, %v552
      %v554 = vlaneseq
      %v555 = vshrl.u32 %v554, 7
      %v556 = vsub.s32 0, %v555
      %v557 = vrot.slane %v319, %v556
      %v558 = vlaneseq
      %v559 = vshrl.u32 %v558, 7
      %v560 = vsub.s32 0, %v559
      %v561 = vrot.slane %v327, %v560
      %v562 = vlaneseq
      %v563 = vshrl.u32 %v562, 7
      %v564 = vsub.s32 0, %v563
      %v565 = vrot.slane %v335, %v564
      %v566 = vlaneseq
      %v567 = vshrl.u32 %v566, 7
      %v568 = vsub.s32 0, %v567
      %v569 = vrot.slane %v334, %v568
      %v570 = vlaneseq
      %v571 = vshrl.u32 %v570, 7
      %v572 = vsub.s32 0, %v571
      %v573 = vrot.slane %v336, %v572
      %v574 = vlaneseq
      %v575 = vshrl.u32 %v574, 7
      %v576 = vsub.s32 0, %v575
      %v577 = vrot.slane %v344, %v576
      %v578 = vlaneseq
      %v579 = vshrl.u32 %v578, 7
      %v580 = vsub.s32 0, %v579
      %v581 = vrot.slane %v352, %v580
      %v582 = vlaneseq
      %v583 = vshrl.u32 %v582, 7
      %v584 = vsub.s32 0, %v583
      %v585 = vrot.slane %v351, %v584
      %v586 = vlaneseq
      %v587 = vshrl.u32 %v586, 7
      %v588 = vsub.s32 0, %v587
      %v589 = vrot.slane %v353, %v588
      %v590 = vlaneseq
      %v591 = vshrl.u32 %v590, 7
      %v592 = vsub.s32 0, %v591
      %v593 = vrot.slane %v361, %v592
      %v594 = vlaneseq
      %v595 = vshrl.u32 %v594, 7
      %v596 = vsub.s32 0, %v595
      %v597 = vrot.slane %v369, %v596
      %v598 = vlaneseq
      %v599 = vshrl.u32 %v598, 7
      %v600 = vsub.s32 0, %v599
      %v601 = vrot.slane %v368, %v600
      %v602 = vlaneseq
      %v603 = vshrl.u32 %v602, 7
      %v604 = vsub.s32 0, %v603
      %v605 = vrot.slane %v370, %v604
      %v606 = vsel %vm435, %v549, %v545
      %v607 = vsel %vm437, %v553, %v606
      %v608 = vsel %vm439, %v557, %v607
      %v609 = vsel %vm435, %v565, %v561
      %v610 = vsel %vm437, %v569, %v609
      %v611 = vsel %vm439, %v573, %v610
      %v612 = vsel %vm435, %v581, %v577
      %v613 = vsel %vm437, %v585, %v612
      %v614 = vsel %vm439, %v589, %v613
      %v615 = vsel %vm435, %v597, %v593
      %v616 = vsel %vm437, %v601, %v615
      %v617 = vsel %vm439, %v605, %v616
      %618 = vrot.lane.b32.xlu0 %v608, 64
      %v619 = vpop.permute.xlu0 %618
      %620 = vrot.lane.b32.xlu0 %v611, 64
      %v621 = vpop.permute.xlu0 %620
      %622 = vrot.lane.b32.xlu0 %v614, 64
      %v623 = vpop.permute.xlu0 %622
      %624 = vrot.lane.b32.xlu0 %v617, 64
      %v625 = vpop.permute.xlu0 %624
      %v630 = vlaneseq
      %v631 = vshrl.u32 %v630, 7
      %v632 = vsub.s32 1, %v631
      %v633 = vrot.slane %v310, %v632
      %v634 = vlaneseq
      %v635 = vshrl.u32 %v634, 7
      %v636 = vsub.s32 1, %v635
      %v637 = vrot.slane %v318, %v636
      %v638 = vlaneseq
      %v639 = vshrl.u32 %v638, 7
      %v640 = vsub.s32 1, %v639
      %v641 = vrot.slane %v317, %v640
      %v642 = vlaneseq
      %v643 = vshrl.u32 %v642, 7
      %v644 = vsub.s32 1, %v643
      %v645 = vrot.slane %v319, %v644
      %v646 = vlaneseq
      %v647 = vshrl.u32 %v646, 7
      %v648 = vsub.s32 1, %v647
      %v649 = vrot.slane %v327, %v648
      %v650 = vlaneseq
      %v651 = vshrl.u32 %v650, 7
      %v652 = vsub.s32 1, %v651
      %v653 = vrot.slane %v335, %v652
      %v654 = vlaneseq
      %v655 = vshrl.u32 %v654, 7
      %v656 = vsub.s32 1, %v655
      %v657 = vrot.slane %v334, %v656
      %v658 = vlaneseq
      %v659 = vshrl.u32 %v658, 7
      %v660 = vsub.s32 1, %v659
      %v661 = vrot.slane %v336, %v660
      %v662 = vlaneseq
      %v663 = vshrl.u32 %v662, 7
      %v664 = vsub.s32 1, %v663
      %v665 = vrot.slane %v344, %v664
      %v666 = vlaneseq
      %v667 = vshrl.u32 %v666, 7
      %v668 = vsub.s32 1, %v667
      %v669 = vrot.slane %v352, %v668
      %v670 = vlaneseq
      %v671 = vshrl.u32 %v670, 7
      %v672 = vsub.s32 1, %v671
      %v673 = vrot.slane %v351, %v672
      %v674 = vlaneseq
      %v675 = vshrl.u32 %v674, 7
      %v676 = vsub.s32 1, %v675
      %v677 = vrot.slane %v353, %v676
      %v678 = vlaneseq
      %v679 = vshrl.u32 %v678, 7
      %v680 = vsub.s32 1, %v679
      %v681 = vrot.slane %v361, %v680
      %v682 = vlaneseq
      %v683 = vshrl.u32 %v682, 7
      %v684 = vsub.s32 1, %v683
      %v685 = vrot.slane %v369, %v684
      %v686 = vlaneseq
      %v687 = vshrl.u32 %v686, 7
      %v688 = vsub.s32 1, %v687
      %v689 = vrot.slane %v368, %v688
      %v690 = vlaneseq
      %v691 = vshrl.u32 %v690, 7
      %v692 = vsub.s32 1, %v691
      %v693 = vrot.slane %v370, %v692
      %v694 = vsel %vm435, %v637, %v633
      %v695 = vsel %vm437, %v641, %v694
      %v696 = vsel %vm439, %v645, %v695
      %v697 = vsel %vm435, %v653, %v649
      %v698 = vsel %vm437, %v657, %v697
      %v699 = vsel %vm439, %v661, %v698
      %v700 = vsel %vm435, %v669, %v665
      %v701 = vsel %vm437, %v673, %v700
      %v702 = vsel %vm439, %v677, %v701
      %v703 = vsel %vm435, %v685, %v681
      %v704 = vsel %vm437, %v689, %v703
      %v705 = vsel %vm439, %v693, %v704
      %706 = vrot.lane.b32.xlu0 %v696, 96
      %v707 = vpop.permute.xlu0 %706
      %708 = vrot.lane.b32.xlu0 %v699, 96
      %v709 = vpop.permute.xlu0 %708
      %710 = vrot.lane.b32.xlu0 %v702, 96
      %v711 = vpop.permute.xlu0 %710
      %712 = vrot.lane.b32.xlu0 %v705, 96
      %v713 = vpop.permute.xlu0 %712
      %vm718 = vcmask 261120
      %v719 = vsel %vm718, %v440, %v531
      %v720 = vsel %vm718, %v443, %v533
      %v721 = vsel %vm718, %v446, %v535
      %v722 = vsel %vm718, %v449, %v537
      %vm723 = vcmask 523264
      %v724 = vsel %vm723, %v719, %v619
      %v725 = vsel %vm723, %v720, %v621
      %v726 = vsel %vm723, %v721, %v623
      %v727 = vsel %vm723, %v722, %v625
      %vm728 = vcmask 785408
      %v729 = vsel %vm728, %v724, %v707
      %v730 = vsel %vm728, %v725, %v709
      %v731 = vsel %vm728, %v726, %v711
      %v732 = vsel %vm728, %v727, %v713
      %v733 = vld [vmem:[%s1] sm:$0xf]
      %v734 = vld [vmem:[%s1 + $0x4] sm:$0xf]
      %v735 = vld [vmem:[%s1 + $0x8] sm:$0xf]
      %v736 = vld [vmem:[%s1 + $0xc] sm:$0xf]
      %v737 = vld [vmem:[%s1 + $0x10] sm:$0xf]
      %v738 = vld [vmem:[%s1 + $0x14] sm:$0xf]
      %v739 = vld [vmem:[%s1 + $0x18] sm:$0xf]
      %v740 = vld [vmem:[%s1 + $0x1c] sm:$0xf]
      %v741 = vld [vmem:[%s1 + $0x20] sm:$0xf]
      %v742 = vld [vmem:[%s1 + $0x24] sm:$0xf]
      %v743 = vld [vmem:[%s1 + $0x28] sm:$0xf]
      %v744 = vld [vmem:[%s1 + $0x2c] sm:$0xf]
      %v745 = vld [vmem:[%s1 + $0x30] sm:$0xf]
      %v746 = vld [vmem:[%s1 + $0x34] sm:$0xf]
      %v747 = vld [vmem:[%s1 + $0x38] sm:$0xf]
      %v748 = vld [vmem:[%s1 + $0x3c] sm:$0xf]
      %v749 = vld [vmem:[%s2] sm:$0x1]
      %v750 = vld [vmem:[%s3] sm:$0x1]
      %v755 = vcombine.low %v729, %v730
      %v756 = vcombine.low %v731, %v732
      %759 = vadd.xlane.f32.xlu0 %v755
      %v760 = vpop.xlane.xlu0 %759
      %761 = vadd.xlane.f32.xlu0 %v756
      %v762 = vpop.xlane.xlu0 %761
      %v763 = vmul.f32 %v729, %v729
      %v764 = vmul.f32 %v730, %v730
      %v765 = vmul.f32 %v731, %v731
      %v766 = vmul.f32 %v732, %v732
      %v771 = vcombine.low %v763, %v764
      %v772 = vcombine.low %v765, %v766
      %775 = vadd.xlane.f32.xlu0 %v771
      %v776 = vpop.xlane.xlu0 %775
      %777 = vadd.xlane.f32.xlu0 %v772
      %v778 = vpop.xlane.xlu0 %777
      %v779 = vmul.f32 %v760, 0.0078125
      %v780 = vmul.f32 %v762, 0.0078125
      %v781 = vmul.f32 %v776, 0.0078125
      %v782 = vmul.f32 %v778, 0.0078125
      %v783 = vmul.f32 %v779, %v779
      %v784 = vmul.f32 %v780, %v780
      %v785 = vsub.f32 %v781, %v783
      %v786 = vsub.f32 %v782, %v784
      %v787 = vmax.f32 %v785, 0.0
      %v788 = vmax.f32 %v786, 0.0
      %v789 = vadd.f32 %v787, 1e-05
      %v790 = vadd.f32 %v788, 1e-05
      %v791 = vrsqrt.pop %v789
      %v792 = vrsqrt.pop %v790
      %v793 = vpack.c.bf16 %v756, %v755
      %v810 = vunpack.c.l.b16 %v733
      %v811 = vunpack.c.l.b16 %v734
      %v812 = vunpack.c.l.b16 %v735
      %v813 = vunpack.c.l.b16 %v736
      %v814 = vunpack.c.l.b16 %v737
      %v815 = vunpack.c.l.b16 %v738
      %v816 = vunpack.c.l.b16 %v739
      %v817 = vunpack.c.l.b16 %v740
      %v818 = vunpack.c.l.b16 %v741
      %v819 = vunpack.c.l.b16 %v742
      %v820 = vunpack.c.l.b16 %v743
      %v821 = vunpack.c.l.b16 %v744
      %v822 = vunpack.c.l.b16 %v745
      %v823 = vunpack.c.l.b16 %v746
      %v824 = vunpack.c.l.b16 %v747
      %v825 = vunpack.c.l.b16 %v748
      %v826 = vpack.c.b16 %v811, %v810
      %v827 = vpack.c.b16 %v813, %v812
      %v828 = vpack.c.b16 %v815, %v814
      %v829 = vpack.c.b16 %v817, %v816
      %v830 = vpack.c.b16 %v819, %v818
      %v831 = vpack.c.b16 %v821, %v820
      %v832 = vpack.c.b16 %v823, %v822
      %v833 = vpack.c.b16 %v825, %v824
      %842 = vmatprep.subr.bf16.mxu0 0
      %843 = vmatpush1.bf16.msra.mxu0 %v826
      %844 = vmatprep.subr.bf16.mxu0 0
      %845 = vmatpush1.bf16.msra.mxu0 %v827
      %846 = vmatprep.subr.bf16.mxu0 0
      %847 = vmatpush1.bf16.msra.mxu0 %v828
      %848 = vmatprep.subr.bf16.mxu0 0
      %849 = vmatpush1.bf16.msra.mxu0 %v829
      %850 = vmatprep.subr.bf16.mxu0 0
      %851 = vmatpush1.bf16.msra.mxu0 %v830
      %852 = vmatprep.subr.bf16.mxu0 0
      %853 = vmatpush1.bf16.msra.mxu0 %v831
      %854 = vmatprep.subr.bf16.mxu0 0
      %855 = vmatpush1.bf16.msra.mxu0 %v832
      %856 = vmatprep.subr.bf16.mxu0 0
      %857 = vmatpush1.bf16.msra.mxu0 %v833
      %858 = vmatprep.subr.bf16.mxu0 0
      %859 = vmatpush1.bf16.msra.mxu0 0
      %860 = vmatprep.subr.bf16.mxu0 0
      %861 = vmatpush1.bf16.msra.mxu0 0
      %862 = vmatprep.subr.bf16.mxu0 0
      %863 = vmatpush1.bf16.msra.mxu0 0
      %864 = vmatprep.subr.bf16.mxu0 0
      %865 = vmatpush1.bf16.msra.mxu0 0
      %866 = vmatprep.subr.bf16.mxu0 0
      %867 = vmatpush1.bf16.msra.mxu0 0
      %868 = vmatprep.subr.bf16.mxu0 0
      %869 = vmatpush1.bf16.msra.mxu0 0
      %870 = vmatprep.subr.bf16.mxu0 0
      %871 = vmatpush1.bf16.msra.mxu0 0
      %872 = vmatprep.subr.bf16.mxu0 0
      %873 = vmatpush1.bf16.msra.mxu0 0
      %874 = vmatprep.mubr.bf16.mxu0 0
      %875 = vmatmul.mubr.bf16.gmra.mrb[0].mxu0 %v793
      %v876 = vpop.f32.mrb[0].mxu0
      %v877 = vadd.f32 0.0, %v876
      %v878 = vpop.f32.mrb[0].mxu0
      %v879 = vpop.f32.mrb[0].mxu0
      %v880 = vadd.f32 0.0, %v879
      %v881 = vpop.f32.mrb[0].mxu0
      %882 = vdwg.mxu0
      %v884 = vlaneseq
      %v885 = vshrl.u32 %v884, 7
      %v886 = vsub.s32 0, %v885
      %v887 = vrot.slane %v749, %v886
      %v889 = vmul.f32 %v779, %v887
      %v890 = vmul.f32 %v780, %v887
      %v891 = vsub.f32 %v877, %v889
      %v892 = vsub.f32 %v880, %v890
      %v893 = vmul.f32 %v891, %v791
      %v894 = vmul.f32 %v892, %v792
      %v896 = vlaneseq
      %v897 = vshrl.u32 %v896, 7
      %v898 = vsub.s32 0, %v897
      %v899 = vrot.slane %v750, %v898
      %v901 = vadd.f32 %v893, %v899
      %v902 = vadd.f32 %v894, %v899
      %vm903 = vcmask 253952
      %904 = vst.msk [vmem:[%s197] sm:$0x1] %vm903, %v199
      %905 = vst.msk [vmem:[%s197 + $0x1] sm:$0xff] %vm718, %v901
      %906 = vst.msk [vmem:[%s197 + $0x9] sm:$0xff] %vm718, %v902
      %vm907 = vcmask 254977
      %908 = vst.msk [vmem:[%s197 + $0x10] sm:$0x2] %vm907, %v207
      %p909 = scmp.lt.s32.totalorder %s15, 1
      %s910 = scalar_select %p909, %s15, 1
      %s911 = smul.addr %s910, 3
      %s912 = smul.addr %s911, 8
      %s913 = scalar_lea.vmem %s4, %s912
      // Predicated region
      $region37: #{tpu_custom_call.1} parent=35 // pred_check
        %p914 = pneg %p122
      $region38: #{tpu_custom_call.1} parent=35 // pred_check_branch
        %916 = sbr.rel (%p914) target = $region40
      $region39: #{tpu_custom_call.1} parent=35 // pred_region
        _
      $region40: #{tpu_custom_call.1} parent=35 // pred_fallthru
        _
    $region36: #{tpu_custom_call.1} parent=5 // pred_fallthru
      _
    %p917 = scmp.le.s32.totalorder 2, %s10
    // Predicated region
    $region41: #{tpu_custom_call.1} parent=5 // pred_check
      %p918 = pneg %p917
    $region42: #{tpu_custom_call.1} parent=5 // pred_check_branch
      %920 = sbr.rel (%p918) target = $region44
    $region43: #{tpu_custom_call.1} parent=5 // pred_region
      %s921 = ssub.s32 %s10, 2
      // Predicated region
      $region45: #{tpu_custom_call.1} parent=43 // pred_check
        %p922 = pneg %p128
      $region46: #{tpu_custom_call.1} parent=43 // pred_check_branch
        %924 = sbr.rel (%p922) target = $region48
      $region47: #{tpu_custom_call.1} parent=43 // pred_region
        %p925 = scmp.lt.s32.totalorder %s16, 1
        %s926 = scalar_select %p925, %s16, 1
        %s927 = smul.addr %s926, 3
        %s928 = smul.addr %s927, 8
        %s929 = scalar_lea.vmem %s4, %s928
      $region48: #{tpu_custom_call.1} parent=43 // pred_fallthru
        _
    $region44: #{tpu_custom_call.1} parent=5 // pred_fallthru
      _
  $region6: #{tpu_custom_call.1} parent=0 // loop_footer
    %s14 = sadd.s32 1, %s10
  $region7: #{tpu_custom_call.1} parent=0 // loop_footer_branch
    %9 = sbr.rel target = $region3
  $region8: #{tpu_custom_call.1} parent=0 // loop_exit
    _

// kernel: tpu_custom_call.1
$region0: #{tpu_custom_call.1}
  #allocation0 [shape = 'u32[]', space=smem, size = 0x4, offset = 0x4, fixed_abs, tag = 'smem constant byte address 0x4 - core index']
  #allocation1 [shape = 'u32[144,128]{1,0:T(1,128)}', space=vmem, size = 0x12000, scoped, tag = 'internal scratch']
  %s0 = inlined_call_operand.hbm [shape: f32[32,128], index: 0, kind: input, shape index: {}]
  %s1 = inlined_call_operand.hbm [shape: bf16[128,32], index: 1, kind: input, shape index: {}]
  %s2 = inlined_call_operand.hbm [shape: f32[1,32], index: 2, kind: input, shape index: {}]
  %s3 = inlined_call_operand.hbm [shape: f32[1,32], index: 3, kind: input, shape index: {}]
  %s4 = inlined_call_operand.hbm [shape: f32[32,32], index: 4, kind: output, shape index: {}]
  %s5 = sld [smem:[#allocation0]]
  $region42: #{tpu_custom_call.1} parent=0
    _
  %s7 = ssub.s32 1, %s5
  %s8 = scalar_select 0, %s7, %s5
  $region1: #{tpu_custom_call.1} parent=0
    #allocation2 [shape = 'u8[16384]{0}', space=vmem, size = 0x4000, scoped, tag = 'input window, operand 0, single buffered']
    #allocation3 [shape = 's32[1]{0}', space=sflag, size = 0x4, scoped, tag = 'scoped memory for tpu_custom_call.1']
    #allocation4 [shape = 's32[1]{0}', space=sflag, size = 0x4, scoped, tag = 'scoped memory for tpu_custom_call.1']
    #allocation5 [shape = 'u8[32768]{0}', space=vmem, size = 0x8000, scoped, tag = 'input window, operand 1, single buffered']
    #allocation6 [shape = 's32[1]{0}', space=sflag, size = 0x4, scoped, tag = 'scoped memory for tpu_custom_call.1']
    #allocation7 [shape = 'u8[512]{0}', space=vmem, size = 0x400, scoped, tag = 'input window, operand 2, single buffered']
    #allocation8 [shape = 'u8[512]{0}', space=vmem, size = 0x400, scoped, tag = 'input window, operand 3, single buffered']
    #allocation9 [shape = 's32[1]{0}', space=sflag, size = 0x4, scoped, tag = 'scoped memory for tpu_custom_call.1']
    #allocation10 [shape = 'u8[16384]{0}', space=vmem, size = 0x4000, scoped, tag = 'output window, operand 0, single buffered']
    %9 = vsyncpa [#allocation3], 0
    %10 = vsyncpa [#allocation6], 0
    %11 = vsyncpa [#allocation9], 0
    %12 = vsyncpa [#allocation4], 0
    // Predicated region
    $region2: #{tpu_custom_call.1} parent=1 // pred_check
      _
    $region3: #{tpu_custom_call.1} parent=1 // pred_check_branch
      %14 = sbr.rel (0) target = $region5
    $region4: #{tpu_custom_call.1} parent=1 // pred_region
      %s16 = ssub.s32 512, 512
      %17 = vsyncadd [#allocation3], %s16
      %s18 = sshll.u32 [#allocation2], 4
      %s19 = int_to_ptr.vmem [resolvable:$true] %s18
      %24 = dma.hbm_to_vmem [thread:$0]  %s0, 512, %s19, [#allocation3], 128, 128, 8
    $region5: #{tpu_custom_call.1} parent=1 // pred_fallthru
      _
    // Predicated region
    $region6: #{tpu_custom_call.1} parent=1 // pred_check
      _
    $region7: #{tpu_custom_call.1} parent=1 // pred_check_branch
      %26 = sbr.rel (0) target = $region9
    $region8: #{tpu_custom_call.1} parent=1 // pred_region
      %s28 = ssub.s32 1024, 1024
      %29 = vsyncadd [#allocation6], %s28
      %s30 = sshll.u32 [#allocation5], 4
      %s31 = int_to_ptr.vmem [resolvable:$true] %s30
      %36 = dma.hbm_to_vmem [thread:$0]  %s1, 1024, %s31, [#allocation6], 64, 64, 4
    $region9: #{tpu_custom_call.1} parent=1 // pred_fallthru
      _
    // Predicated region
    $region10: #{tpu_custom_call.1} parent=1 // pred_check
      _
    $region11: #{tpu_custom_call.1} parent=1 // pred_check_branch
      %38 = sbr.rel (0) target = $region13
    $region12: #{tpu_custom_call.1} parent=1 // pred_region
      %s40 = ssub.s32 16, 16
      %41 = vsyncadd [#allocation6], %s40
      %s43 = sshll.u32 [#allocation7], 4
      %s44 = int_to_ptr.vmem [resolvable:$true] %s43
      %46 = dma.hbm_to_vmem [thread:$0]  %s2, 16, %s44, [#allocation6]
    $region13: #{tpu_custom_call.1} parent=1 // pred_fallthru
      _
    // Predicated region
    $region14: #{tpu_custom_call.1} parent=1 // pred_check
      _
    $region15: #{tpu_custom_call.1} parent=1 // pred_check_branch
      %48 = sbr.rel (0) target = $region17
    $region16: #{tpu_custom_call.1} parent=1 // pred_region
      %s50 = ssub.s32 16, 16
      %51 = vsyncadd [#allocation9], %s50
      %s53 = sshll.u32 [#allocation8], 4
      %s54 = int_to_ptr.vmem [resolvable:$true] %s53
      %56 = dma.hbm_to_vmem [thread:$0]  %s3, 16, %s54, [#allocation9]
    $region17: #{tpu_custom_call.1} parent=1 // pred_fallthru
      _
    // Predicated region
    $region18: #{tpu_custom_call.1} parent=1 // pred_check
      _
    $region19: #{tpu_custom_call.1} parent=1 // pred_check_branch
      %58 = sbr.rel (0) target = $region21
    $region20: #{tpu_custom_call.1} parent=1 // pred_region
      %59 = dma.done [#allocation3], 512
    $region21: #{tpu_custom_call.1} parent=1 // pred_fallthru
      _
    // Predicated region
    $region22: #{tpu_custom_call.1} parent=1 // pred_check
      _
    $region23: #{tpu_custom_call.1} parent=1 // pred_check_branch
      %61 = sbr.rel (0) target = $region25
    $region24: #{tpu_custom_call.1} parent=1 // pred_region
      %62 = dma.done [#allocation6], 1024
    $region25: #{tpu_custom_call.1} parent=1 // pred_fallthru
      _
    // Predicated region
    $region26: #{tpu_custom_call.1} parent=1 // pred_check
      _
    $region27: #{tpu_custom_call.1} parent=1 // pred_check_branch
      %64 = sbr.rel (0) target = $region29
    $region28: #{tpu_custom_call.1} parent=1 // pred_region
      %65 = dma.done [#allocation6], 16
    $region29: #{tpu_custom_call.1} parent=1 // pred_fallthru
      _
    // Predicated region
    $region30: #{tpu_custom_call.1} parent=1 // pred_check
      _
    $region31: #{tpu_custom_call.1} parent=1 // pred_check_branch
      %67 = sbr.rel (0) target = $region33
    $region32: #{tpu_custom_call.1} parent=1 // pred_region
      %68 = dma.done [#allocation9], 16
    $region33: #{tpu_custom_call.1} parent=1 // pred_fallthru
      _
    %v70 = vld [vmem:[#allocation2] sm:$0xff]
    %v71 = vld [vmem:[#allocation2 + $0x8] sm:$0xff]
    %v72 = vld [vmem:[#allocation2 + $0x10] sm:$0xff]
    %v73 = vld [vmem:[#allocation2 + $0x18] sm:$0xff]
    %v74 = vld [vmem:[#allocation5] sm:$0xf]
    %v75 = vld [vmem:[#allocation5 + $0x4] sm:$0xf]
    %v76 = vld [vmem:[#allocation5 + $0x8] sm:$0xf]
    %v77 = vld [vmem:[#allocation5 + $0xc] sm:$0xf]
    %v78 = vld [vmem:[#allocation5 + $0x10] sm:$0xf]
    %v79 = vld [vmem:[#allocation5 + $0x14] sm:$0xf]
    %v80 = vld [vmem:[#allocation5 + $0x18] sm:$0xf]
    %v81 = vld [vmem:[#allocation5 + $0x1c] sm:$0xf]
    %v82 = vld [vmem:[#allocation5 + $0x20] sm:$0xf]
    %v83 = vld [vmem:[#allocation5 + $0x24] sm:$0xf]
    %v84 = vld [vmem:[#allocation5 + $0x28] sm:$0xf]
    %v85 = vld [vmem:[#allocation5 + $0x2c] sm:$0xf]
    %v86 = vld [vmem:[#allocation5 + $0x30] sm:$0xf]
    %v87 = vld [vmem:[#allocation5 + $0x34] sm:$0xf]
    %v88 = vld [vmem:[#allocation5 + $0x38] sm:$0xf]
    %v89 = vld [vmem:[#allocation5 + $0x3c] sm:$0xf]
    %v90 = vld [vmem:[#allocation7] sm:$0x1]
    %v91 = vld [vmem:[#allocation8] sm:$0x1]
    %92 = vadd.xlane.f32.xlu0 %v70
    %v93 = vpop.xlane.xlu0 %92
    %94 = vadd.xlane.f32.xlu0 %v71
    %v95 = vpop.xlane.xlu0 %94
    %96 = vadd.xlane.f32.xlu0 %v72
    %v97 = vpop.xlane.xlu0 %96
    %98 = vadd.xlane.f32.xlu0 %v73
    %v99 = vpop.xlane.xlu0 %98
    %v100 = vmul.f32 %v70, %v70
    %v101 = vmul.f32 %v71, %v71
    %v102 = vmul.f32 %v72, %v72
    %v103 = vmul.f32 %v73, %v73
    %104 = vadd.xlane.f32.xlu0 %v100
    %v105 = vpop.xlane.xlu0 %104
    %106 = vadd.xlane.f32.xlu0 %v101
    %v107 = vpop.xlane.xlu0 %106
    %108 = vadd.xlane.f32.xlu0 %v102
    %v109 = vpop.xlane.xlu0 %108
    %110 = vadd.xlane.f32.xlu0 %v103
    %v111 = vpop.xlane.xlu0 %110
    %v112 = vmul.f32 %v93, 0.0078125
    %v113 = vmul.f32 %v95, 0.0078125
    %v114 = vmul.f32 %v97, 0.0078125
    %v115 = vmul.f32 %v99, 0.0078125
    %v116 = vmul.f32 %v105, 0.0078125
    %v117 = vmul.f32 %v107, 0.0078125
    %v118 = vmul.f32 %v109, 0.0078125
    %v119 = vmul.f32 %v111, 0.0078125
    %v120 = vmul.f32 %v112, %v112
    %v121 = vmul.f32 %v113, %v113
    %v122 = vmul.f32 %v114, %v114
    %v123 = vmul.f32 %v115, %v115
    %v124 = vsub.f32 %v116, %v120
    %v125 = vsub.f32 %v117, %v121
    %v126 = vsub.f32 %v118, %v122
    %v127 = vsub.f32 %v119, %v123
    %v128 = vmax.f32 %v124, 0.0
    %v129 = vmax.f32 %v125, 0.0
    %v130 = vmax.f32 %v126, 0.0
    %v131 = vmax.f32 %v127, 0.0
    %v132 = vadd.f32 %v128, 1e-05
    %v133 = vadd.f32 %v129, 1e-05
    %v134 = vadd.f32 %v130, 1e-05
    %v135 = vadd.f32 %v131, 1e-05
    %v136 = vrsqrt.pop %v132
    %v137 = vrsqrt.pop %v133
    %v138 = vrsqrt.pop %v134
    %v139 = vrsqrt.pop %v135
    %v140 = vpack.c.bf16 %v71, %v70
    %v141 = vpack.c.bf16 %v73, %v72
    %v158 = vunpack.c.l.b16 %v74
    %v159 = vunpack.c.l.b16 %v75
    %v160 = vunpack.c.l.b16 %v76
    %v161 = vunpack.c.l.b16 %v77
    %v162 = vunpack.c.l.b16 %v78
    %v163 = vunpack.c.l.b16 %v79
    %v164 = vunpack.c.l.b16 %v80
    %v165 = vunpack.c.l.b16 %v81
    %v166 = vunpack.c.l.b16 %v82
    %v167 = vunpack.c.l.b16 %v83
    %v168 = vunpack.c.l.b16 %v84
    %v169 = vunpack.c.l.b16 %v85
    %v170 = vunpack.c.l.b16 %v86
    %v171 = vunpack.c.l.b16 %v87
    %v172 = vunpack.c.l.b16 %v88
    %v173 = vunpack.c.l.b16 %v89
    %v174 = vpack.c.b16 %v159, %v158
    %v175 = vpack.c.b16 %v161, %v160
    %v176 = vpack.c.b16 %v163, %v162
    %v177 = vpack.c.b16 %v165, %v164
    %v178 = vpack.c.b16 %v167, %v166
    %v179 = vpack.c.b16 %v169, %v168
    %v180 = vpack.c.b16 %v171, %v170
    %v181 = vpack.c.b16 %v173, %v172
    %190 = vmatprep.subr.bf16.mxu0 0
    %191 = vmatpush1.bf16.msra.mxu0 %v174
    %192 = vmatprep.subr.bf16.mxu0 0
    %193 = vmatpush1.bf16.msra.mxu0 %v175
    %194 = vmatprep.subr.bf16.mxu0 0
    %195 = vmatpush1.bf16.msra.mxu0 %v176
    %196 = vmatprep.subr.bf16.mxu0 0
    %197 = vmatpush1.bf16.msra.mxu0 %v177
    %198 = vmatprep.subr.bf16.mxu0 0
    %199 = vmatpush1.bf16.msra.mxu0 %v178
    %200 = vmatprep.subr.bf16.mxu0 0
    %201 = vmatpush1.bf16.msra.mxu0 %v179
    %202 = vmatprep.subr.bf16.mxu0 0
    %203 = vmatpush1.bf16.msra.mxu0 %v180
    %204 = vmatprep.subr.bf16.mxu0 0
    %205 = vmatpush1.bf16.msra.mxu0 %v181
    %206 = vmatprep.subr.bf16.mxu0 0
    %207 = vmatpush1.bf16.msra.mxu0 0
    %208 = vmatprep.subr.bf16.mxu0 0
    %209 = vmatpush1.bf16.msra.mxu0 0
    %210 = vmatprep.subr.bf16.mxu0 0
    %211 = vmatpush1.bf16.msra.mxu0 0
    %212 = vmatprep.subr.bf16.mxu0 0
    %213 = vmatpush1.bf16.msra.mxu0 0
    %214 = vmatprep.subr.bf16.mxu0 0
    %215 = vmatpush1.bf16.msra.mxu0 0
    %216 = vmatprep.subr.bf16.mxu0 0
    %217 = vmatpush1.bf16.msra.mxu0 0
    %218 = vmatprep.subr.bf16.mxu0 0
    %219 = vmatpush1.bf16.msra.mxu0 0
    %220 = vmatprep.subr.bf16.mxu0 0
    %221 = vmatpush1.bf16.msra.mxu0 0
    %222 = vmatprep.mubr.bf16.mxu0 0
    %223 = vmatmul.mubr.bf16.gmra.mrb[0].mxu0 %v140
    %v224 = vpop.f32.mrb[0].mxu0
    %v225 = vadd.f32 0.0, %v224
    %v226 = vpop.f32.mrb[0].mxu0
    %v227 = vpop.f32.mrb[0].mxu0
    %v228 = vadd.f32 0.0, %v227
    %v229 = vpop.f32.mrb[0].mxu0
    %230 = vmatprep.mubr.bf16.mxu0 0
    %231 = vmatmul.mubr.bf16.gmra.mrb[0].mxu0 %v141
    %v232 = vpop.f32.mrb[0].mxu0
    %v233 = vadd.f32 0.0, %v232
    %v234 = vpop.f32.mrb[0].mxu0
    %v235 = vpop.f32.mrb[0].mxu0
    %v236 = vadd.f32 0.0, %v235
    %v237 = vpop.f32.mrb[0].mxu0
    %238 = vdwg.mxu0
    %v240 = vlaneseq
    %v241 = vshrl.u32 %v240, 7
    %v242 = vsub.s32 0, %v241
    %v243 = vrot.slane %v90, %v242
    %v245 = vmul.f32 %v112, %v243
    %v246 = vmul.f32 %v113, %v243
    %v247 = vmul.f32 %v114, %v243
    %v248 = vmul.f32 %v115, %v243
    %v249 = vsub.f32 %v225, %v245
    %v250 = vsub.f32 %v228, %v246
    %v251 = vsub.f32 %v233, %v247
    %v252 = vsub.f32 %v236, %v248
    %v253 = vmul.f32 %v249, %v136
    %v254 = vmul.f32 %v250, %v137
    %v255 = vmul.f32 %v251, %v138
    %v256 = vmul.f32 %v252, %v139
    %v258 = vlaneseq
    %v259 = vshrl.u32 %v258, 7
    %v260 = vsub.s32 0, %v259
    %v261 = vrot.slane %v91, %v260
    %v263 = vadd.f32 %v253, %v261
    %v264 = vadd.f32 %v254, %v261
    %v265 = vadd.f32 %v255, %v261
    %v266 = vadd.f32 %v256, %v261
    %vm267 = vcmask 261120
    %268 = vst.msk [vmem:[#allocation10] sm:$0xff] %vm267, %v263
    %269 = vst.msk [vmem:[#allocation10 + $0x8] sm:$0xff] %vm267, %v264
    %270 = vst.msk [vmem:[#allocation10 + $0x10] sm:$0xff] %vm267, %v265
    %271 = vst.msk [vmem:[#allocation10 + $0x18] sm:$0xff] %vm267, %v266
    // Predicated region
    $region34: #{tpu_custom_call.1} parent=1 // pred_check
      _
    $region35: #{tpu_custom_call.1} parent=1 // pred_check_branch
      %273 = sbr.rel (0) target = $region37
    $region36: #{tpu_custom_call.1} parent=1 // pred_region
      %s275 = ssub.s32 512, 512
      %276 = vsyncadd [#allocation4], %s275
      %s277 = sshll.u32 [#allocation10], 4
      %s278 = int_to_ptr.vmem [resolvable:$true] %s277
      %283 = dma.vmem_to_hbm [thread:$0]  %s278, 512, %s4, [#allocation4], 128, 128, 8
    $region37: #{tpu_custom_call.1} parent=1 // pred_fallthru
      _
    // Predicated region
    $region38: #{tpu_custom_call.1} parent=1 // pred_check
      _
    $region39: #{tpu_custom_call.1} parent=1 // pred_check_branch
      %285 = sbr.rel (0) target = $region41
    $region40: #{tpu_custom_call.1} parent=1 // pred_region
      %286 = dma.done [#allocation4], 512
    $region41: #{tpu_custom_call.1} parent=1 // pred_fallthru
      _
    %287 = vsyncpa [#allocation3], 1
    %288 = vsyncpa [#allocation6], 1
    %289 = vsyncpa [#allocation9], 1
    %290 = vsyncpa [#allocation4], 1

</llo_original>
